<compile_context>
chip_gen: v6e
topology: v6e:2x2x1
jax: 0.10.0
libtpu: 0.0.40
codegen_flags: <defaults>
</compile_context>

<pallas_src>
import jax
import jax.numpy as jnp
from jax import lax
from jax.experimental import pallas as pl
from jax.experimental.pallas import tpu as pltpu


# ----------------------------- forward kernel ------------------------------
def _linreg_fwd_kernel(x_ref, w_ref, b_ref, o_ref):
    # x_ref: (TB, F) batch tile, w_ref: (8, F) resident weight (row 0 real),
    # b_ref: (1,) bias in SMEM, o_ref: (1, TB) lane-dense output slab.
    x = x_ref[...]
    w = w_ref[...]
    # Contract the F (lane) dims of both operands: (8, F) x (TB, F) -> (8, TB).
    # No operand transpose is materialized and the result is lane-dense.
    y = lax.dot_general(
        w, x,
        dimension_numbers=(((1,), (1,)), ((), ())),
        preferred_element_type=jnp.float32,
    )
    o_ref[...] = (y[0:1, :] + b_ref[0]).astype(o_ref.dtype)


def linear_regression_forward(x, weight, bias, *, tb_max=512):
    """x: (B, F), weight: (1, F), bias: (1,) -> (B, 1)."""
    B, F = x.shape

    # Weight padded to the native 8-sublane tile (rows 1..7 are zeros and the
    # corresponding result rows are never read back). Tiny, done once per call.
    w8 = jnp.pad(weight.astype(x.dtype), ((0, 7), (0, 0)))
    b1 = bias.reshape(1).astype(jnp.float32)

    if B <= tb_max:
        # Single block: block dims equal full array dims, no padding needed.
        TB, Bp = B, B
    else:
        # Batch tile: multiple of 128 rows, sized so the double-buffered x
        # tile stays well inside the scoped VMEM budget (~8 MiB of x buffers;
        # safe even on v7x's 32 MiB scoped default).
        bytes_per_row = F * jnp.dtype(x.dtype).itemsize
        rows = (8 * 1024 * 1024) // (2 * bytes_per_row)
        rows = max(128, min(tb_max, (rows // 128) * 128))
        TB = rows
        Bp = pl.cdiv(B, TB) * TB
        if Bp != B:
            # Ragged batch: pad up to a whole number of tiles (extra rows are
            # sliced off below). One extra XLA pad pass over x in this case.
            x = jnp.pad(x, ((0, Bp - B), (0, 0)))
    nb = Bp // TB

    out = pl.pallas_call(
        _linreg_fwd_kernel,
        out_shape=jax.ShapeDtypeStruct((1, Bp), x.dtype),
        grid=(nb,),
        in_specs=[
            pl.BlockSpec((TB, F), lambda i: (i, 0)),        # pipelined x tiles
            pl.BlockSpec((8, F), lambda i: (0, 0)),          # resident weight
            pl.BlockSpec(memory_space=pltpu.SMEM),           # scalar bias
        ],
        out_specs=pl.BlockSpec((1, TB), lambda i: (0, i)),   # lane-dense slab
        compiler_params=pltpu.CompilerParams(
            dimension_semantics=("parallel",),
        ),
    )(x, w8, b1)

    # Free layout plumbing: (1, Bp) lane-dense slab -> (B, 1) column.
    return out.reshape(Bp, 1)[:B]


# -------------------------- regularization kernel --------------------------
def _reg_kernel(w_ref, lam_ref, l1_ref, l2_ref):
    # w_ref: (1, F), lam_ref: (1, 1) in SMEM, outputs: (1, 1) each.
    w = w_ref[...]
    lam = lam_ref[0, 0]
    l1_ref[...] = (lam * jnp.sum(jnp.abs(w))).reshape(1, 1)
    l2_ref[...] = (lam * jnp.sum(w * w)).reshape(1, 1)


def linear_regression_regs(weight, lambda_):
    """Returns (l1_reg, l2_reg) scalars; both computed in one kernel pass."""
    F = weight.shape[1]
    lam = jnp.full((1, 1), lambda_, dtype=jnp.float32)
    l1, l2 = pl.pallas_call(
        _reg_kernel,
        out_shape=(
            jax.ShapeDtypeStruct((1, 1), jnp.float32),
            jax.ShapeDtypeStruct((1, 1), jnp.float32),
        ),
        in_specs=[
            pl.BlockSpec((1, F), lambda: (0, 0)),
            pl.BlockSpec(memory_space=pltpu.SMEM),
        ],
        out_specs=(
            pl.BlockSpec((1, 1), lambda: (0, 0)),
            pl.BlockSpec((1, 1), lambda: (0, 0)),
        ),
    )(weight, lam)
    return l1[0, 0], l2[0, 0]


# --------------------------------- driver ----------------------------------
if __name__ == "__main__":
    in_features = 32
    batch = 8
    lambda_ = 0.01

    key = jax.random.PRNGKey(0)
    kx, kw, kb, kx2 = jax.random.split(key, 4)

    # Deterministic init mimicking nn.Linear's uniform(-1/sqrt(F), 1/sqrt(F)).
    bound = 1.0 / jnp.sqrt(jnp.float32(in_features))
    weight = jax.random.uniform(kw, (1, in_features), jnp.float32, -bound, bound)
    bias = jax.random.uniform(kb, (1,), jnp.float32, -bound, bound)

    # Small single-block case (matches the module's typical tiny inputs).
    x = jax.random.normal(kx, (batch, in_features), jnp.float32)
    y = linear_regression_forward(x, weight, bias)
    jax.block_until_ready(y)
    y_ref = x @ weight.T + bias
    assert y.shape == (batch, 1)
    assert jnp.allclose(y, y_ref, atol=1e-5, rtol=1e-5)

    # Multi-block case: exercises the batch grid, pipelining, parallel
    # semantics and the ragged-batch padding path (200 rows -> 2 tiles of 128).
    x2 = jax.random.normal(kx2, (200, in_features), jnp.float32)
    y2 = linear_regression_forward(x2, weight, bias, tb_max=128)
    jax.block_until_ready(y2)
    y2_ref = x2 @ weight.T + bias
    assert y2.shape == (200, 1)
    assert jnp.allclose(y2, y2_ref, atol=1e-5, rtol=1e-5)

    l1, l2 = linear_regression_regs(weight, lambda_)
    jax.block_until_ready((l1, l2))
    assert jnp.allclose(l1, lambda_ * jnp.sum(jnp.abs(weight)), atol=1e-6)
    assert jnp.allclose(l2, lambda_ * jnp.sum(weight ** 2), atol=1e-6)

    print("KERNEL_OK")
</pallas_src>

<mosaic_0001>
module attributes {stable_mosaic.version = 11 : i64} {
  func.func @_linreg_fwd_kernel(%arg0: i32, %arg1: memref<8x32xf32, #tpu.memory_space<vmem>>, %arg2: memref<8x32xf32, #tpu.memory_space<vmem>>, %arg3: memref<1xf32, #tpu.memory_space<smem>>, %arg4: memref<1x8xf32, #tpu.memory_space<vmem>>) attributes {dimension_semantics = [#tpu.dimension_semantics<parallel>], iteration_bounds = array<i64: 1>, scalar_prefetch = 0 : i64, scratch_operands = 0 : i64, tpu.core_type = #tpu.core_type<tc>, window_params = [{transform_indices = @transform_0, window_bounds = array<i64: 8, 32>}, {pipeline_mode = #tpu.pipeline_mode<synchronous>, transform_indices = @transform_1, window_bounds = array<i64: 8, 32>}, {transform_indices = @transform_2, window_bounds = array<i64: 1>}, {transform_indices = @transform_3, window_bounds = array<i64: 1, 8>}]} {
    %c0 = arith.constant 0 : index
    %c0_0 = arith.constant 0 : index
    %0 = vector.load %arg1[%c0, %c0_0] : memref<8x32xf32, #tpu.memory_space<vmem>>, vector<8x32xf32>
    %c0_1 = arith.constant 0 : index
    %c0_2 = arith.constant 0 : index
    %1 = vector.load %arg2[%c0_1, %c0_2] : memref<8x32xf32, #tpu.memory_space<vmem>>, vector<8x32xf32>
    %cst = arith.constant dense<0.000000e+00> : vector<8x8xf32>
    %2 = tpu.matmul %1, %0, %cst {dimension_numbers = #tpu.dot_dimension_numbers<[1], [1], [0], [0], [0, 0, 1, 0], [], []>} : vector<8x32xf32>, vector<8x32xf32>, vector<8x8xf32> -> vector<8x8xf32>
    %3 = vector.extract_strided_slice %2 {offsets = [0, 0], sizes = [1, 8], strides = [1, 1]} : vector<8x8xf32> to vector<1x8xf32>
    %c0_3 = arith.constant 0 : index
    %4 = memref.load %arg3[%c0_3] : memref<1xf32, #tpu.memory_space<smem>>
    %5 = vector.broadcast %4 : f32 to vector<1x8xf32>
    %6 = arith.addf %3, %5 : vector<1x8xf32>
    %c0_4 = arith.constant 0 : index
    %c0_5 = arith.constant 0 : index
    %7 = vector.load %arg4[%c0_4, %c0_5] : memref<1x8xf32, #tpu.memory_space<vmem>>, vector<1x8xf32>
    tpu.vector_store %arg4[%c0_4, %c0_5], %6 {strides = array<i32>} : memref<1x8xf32, #tpu.memory_space<vmem>>, vector<1x8xf32>,
    return
  }
  func.func @transform_0(%arg0: i32) -> (i32, i32) {
    %c0_i32 = arith.constant 0 : i32
    %c0_i32_0 = arith.constant 0 : i32
    return %arg0, %c0_i32 : i32, i32
  }
  func.func @transform_1(%arg0: i32) -> (i32, i32) {
    %c0_i32 = arith.constant 0 : i32
    %c0_i32_0 = arith.constant 0 : i32
    %c0_i32_1 = arith.constant 0 : i32
    return %c0_i32, %c0_i32_0 : i32, i32
  }
  func.func @transform_2(%arg0: i32) -> i32 {
    %c0_i32 = arith.constant 0 : i32
    %c0_i32_0 = arith.constant 0 : i32
    return %c0_i32 : i32
  }
  func.func @transform_3(%arg0: i32) -> (i32, i32) {
    %c0_i32 = arith.constant 0 : i32
    %c0_i32_0 = arith.constant 0 : i32
    return %c0_i32, %arg0 : i32, i32
  }
}

</mosaic_0001>

<llo_original>
// kernel: tpu_custom_call.1
$region0: #{tpu_custom_call.1}
  #allocation0 [shape = 'u32[]', space=smem, size = 0x4, offset = 0x4, fixed_abs, tag = 'smem constant byte address 0x4 - core index']
  #allocation1 [shape = 'u32[144,128]{1,0:T(1,128)}', space=vmem, size = 0x12000, scoped, tag = 'internal scratch']
  #allocation2 [shape = 'f32[1]{0:T(128)S(6)}', space=smem, size = 0x200, scoped, tag = 'scoped memory for tpu_custom_call.1']
  %s0 = inlined_call_operand.hbm [shape: f32[8,32], index: 0, kind: input, shape index: {}]
  %s1 = inlined_call_operand.hbm [shape: f32[8,32], index: 1, kind: input, shape index: {}]
  %s2 = inlined_call_operand.<no memory space> [shape: f32[1], index: 2, kind: input, shape index: {}]
  %s3 = inlined_call_operand.hbm [shape: f32[1,8], index: 3, kind: output, shape index: {}]
  %s4 = sld [smem:[#allocation0]]
  $region30: #{tpu_custom_call.1} parent=0
    _
  %s6 = ssub.s32 1, %s4
  %s7 = scalar_select 0, %s6, %s4
  %8 = sst [smem:[#allocation2]] %s2
  $region1: #{tpu_custom_call.1} parent=0
    #allocation3 [shape = 'u8[4096]{0}', space=vmem, size = 0x1000, scoped, tag = 'input window, operand 0, single buffered']
    #allocation4 [shape = 's32[1]{0}', space=sflag, size = 0x4, scoped, tag = 'scoped memory for tpu_custom_call.1']
    #allocation5 [shape = 's32[1]{0}', space=sflag, size = 0x4, scoped, tag = 'scoped memory for tpu_custom_call.1']
    #allocation6 [shape = 'u8[4096]{0}', space=vmem, size = 0x1000, scoped, tag = 'input window, operand 1, single buffered']
    #allocation7 [shape = 's32[1]{0}', space=sflag, size = 0x4, scoped, tag = 'scoped memory for tpu_custom_call.1']
    #allocation8 [shape = 'u8[512]{0}', space=vmem, size = 0x400, scoped, tag = 'output window, operand 0, single buffered']
    %9 = vsyncpa [#allocation4], 0
    %10 = vsyncpa [#allocation7], 0
    %11 = vsyncpa [#allocation5], 0
    // Predicated region
    $region2: #{tpu_custom_call.1} parent=1 // pred_check
      _
    $region3: #{tpu_custom_call.1} parent=1 // pred_check_branch
      %13 = sbr.rel (0) target = $region5
    $region4: #{tpu_custom_call.1} parent=1 // pred_region
      %s15 = ssub.s32 128, 128
      %16 = vsyncadd [#allocation4], %s15
      %s18 = sshll.u32 [#allocation3], 4
      %s19 = int_to_ptr.vmem [resolvable:$true] %s18
      %21 = dma.hbm_to_vmem [thread:$0]  %s0, 128, %s19, [#allocation4]
    $region5: #{tpu_custom_call.1} parent=1 // pred_fallthru
      _
    // Predicated region
    $region6: #{tpu_custom_call.1} parent=1 // pred_check
      _
    $region7: #{tpu_custom_call.1} parent=1 // pred_check_branch
      %23 = sbr.rel (0) target = $region9
    $region8: #{tpu_custom_call.1} parent=1 // pred_region
      %s25 = ssub.s32 128, 128
      %26 = vsyncadd [#allocation7], %s25
      %s28 = sshll.u32 [#allocation6], 4
      %s29 = int_to_ptr.vmem [resolvable:$true] %s28
      %31 = dma.hbm_to_vmem [thread:$0]  %s1, 128, %s29, [#allocation7]
    $region9: #{tpu_custom_call.1} parent=1 // pred_fallthru
      _
    // Predicated region
    $region10: #{tpu_custom_call.1} parent=1 // pred_check
      _
    $region11: #{tpu_custom_call.1} parent=1 // pred_check_branch
      %33 = sbr.rel (0) target = $region13
    $region12: #{tpu_custom_call.1} parent=1 // pred_region
      _
    $region13: #{tpu_custom_call.1} parent=1 // pred_fallthru
      _
    // Predicated region
    $region14: #{tpu_custom_call.1} parent=1 // pred_check
      _
    $region15: #{tpu_custom_call.1} parent=1 // pred_check_branch
      %35 = sbr.rel (0) target = $region17
    $region16: #{tpu_custom_call.1} parent=1 // pred_region
      %36 = dma.done [#allocation4], 128
    $region17: #{tpu_custom_call.1} parent=1 // pred_fallthru
      _
    // Predicated region
    $region18: #{tpu_custom_call.1} parent=1 // pred_check
      _
    $region19: #{tpu_custom_call.1} parent=1 // pred_check_branch
      %38 = sbr.rel (0) target = $region21
    $region20: #{tpu_custom_call.1} parent=1 // pred_region
      %39 = dma.done [#allocation7], 128
    $region21: #{tpu_custom_call.1} parent=1 // pred_fallthru
      _
    %v40 = vld [vmem:[#allocation3] sm:$0xff]
    %v41 = vld [vmem:[#allocation6] sm:$0xff]
    %vm42 = vcmask 261120
    %v44 = vsel %vm42, %v41, 0
    %v47 = vsel %vm42, %v40, 0
    %49 = vmatprep.subr.mxu0 0.0
    %50 = vmatpush1.xpose.msra.mxu0 0.0
    %51 = vmatprep.subr.mxu0 0.0
    %52 = vmatpush1.xpose.msra.mxu0 0.0
    %53 = vmatprep.subr.mxu0 0.0
    %54 = vmatpush1.xpose.msra.mxu0 0.0
    %55 = vmatprep.subr.mxu0 0.0
    %56 = vmatpush1.xpose.msra.mxu0 0.0
    %57 = vmatprep.subr.mxu0 0.0
    %58 = vmatpush1.xpose.msra.mxu0 0.0
    %59 = vmatprep.subr.mxu0 0.0
    %60 = vmatpush1.xpose.msra.mxu0 0.0
    %61 = vmatprep.subr.mxu0 0.0
    %62 = vmatpush1.xpose.msra.mxu0 0.0
    %63 = vmatprep.subr.mxu0 0.0
    %64 = vmatpush1.xpose.msra.mxu0 0.0
    %65 = vmatprep.subr.mxu0 0.0
    %66 = vmatpush1.xpose.msra.mxu0 0.0
    %67 = vmatprep.subr.mxu0 0.0
    %68 = vmatpush1.xpose.msra.mxu0 0.0
    %69 = vmatprep.subr.mxu0 0.0
    %70 = vmatpush1.xpose.msra.mxu0 0.0
    %71 = vmatprep.subr.mxu0 0.0
    %72 = vmatpush1.xpose.msra.mxu0 0.0
    %73 = vmatprep.subr.mxu0 0.0
    %74 = vmatpush1.xpose.msra.mxu0 0.0
    %75 = vmatprep.subr.mxu0 0.0
    %76 = vmatpush1.xpose.msra.mxu0 0.0
    %77 = vmatprep.subr.mxu0 0.0
    %78 = vmatpush1.xpose.msra.mxu0 0.0
    %79 = vmatprep.subr.mxu0 0.0
    %80 = vmatpush1.xpose.msra.mxu0 %v47
    %81 = vmatprep.subr.mxu0 0.0
    %82 = vmatpush2.xpose.msra.mxu0 0.0
    %83 = vmatprep.subr.mxu0 0.0
    %84 = vmatpush2.xpose.msra.mxu0 0.0
    %85 = vmatprep.subr.mxu0 0.0
    %86 = vmatpush2.xpose.msra.mxu0 0.0
    %87 = vmatprep.subr.mxu0 0.0
    %88 = vmatpush2.xpose.msra.mxu0 0.0
    %89 = vmatprep.subr.mxu0 0.0
    %90 = vmatpush2.xpose.msra.mxu0 0.0
    %91 = vmatprep.subr.mxu0 0.0
    %92 = vmatpush2.xpose.msra.mxu0 0.0
    %93 = vmatprep.subr.mxu0 0.0
    %94 = vmatpush2.xpose.msra.mxu0 0.0
    %95 = vmatprep.subr.mxu0 0.0
    %96 = vmatpush2.xpose.msra.mxu0 0.0
    %97 = vmatprep.subr.mxu0 0.0
    %98 = vmatpush2.xpose.msra.mxu0 0.0
    %99 = vmatprep.subr.mxu0 0.0
    %100 = vmatpush2.xpose.msra.mxu0 0.0
    %101 = vmatprep.subr.mxu0 0.0
    %102 = vmatpush2.xpose.msra.mxu0 0.0
    %103 = vmatprep.subr.mxu0 0.0
    %104 = vmatpush2.xpose.msra.mxu0 0.0
    %105 = vmatprep.subr.mxu0 0.0
    %106 = vmatpush2.xpose.msra.mxu0 0.0
    %107 = vmatprep.subr.mxu0 0.0
    %108 = vmatpush2.xpose.msra.mxu0 0.0
    %109 = vmatprep.subr.mxu0 0.0
    %110 = vmatpush2.xpose.msra.mxu0 0.0
    %111 = vmatprep.subr.mxu0 0.0
    %112 = vmatpush2.xpose.msra.mxu0 0.0
    %113 = vmatprep.mubr.f32.mxu0 0.0
    %114 = vmatmul.mubr.f32.gmra.mxu0 %v44
    %v115 = vpop.f32.mrf.mxu0
    %v116 = vadd.f32 0.0, %v115
    %v117 = vpop.f32.mrf.mxu0
    %118 = vdwg.mxu0
    %s119 = sld [smem:[#allocation2]]
    %v120 = vstv %s119
    %v121 = vadd.f32 %v116, %v120
    %vm122 = vcmask 57344
    %123 = vst.msk [vmem:[#allocation8] sm:$0x1] %vm122, %v121
    // Predicated region
    $region22: #{tpu_custom_call.1} parent=1 // pred_check
      _
    $region23: #{tpu_custom_call.1} parent=1 // pred_check_branch
      %125 = sbr.rel (0) target = $region25
    $region24: #{tpu_custom_call.1} parent=1 // pred_region
      %s127 = ssub.s32 16, 16
      %128 = vsyncadd [#allocation5], %s127
      %s130 = sshll.u32 [#allocation8], 4
      %s131 = int_to_ptr.vmem [resolvable:$true] %s130
      %133 = dma.vmem_to_hbm [thread:$0]  %s131, 16, %s3, [#allocation5]
    $region25: #{tpu_custom_call.1} parent=1 // pred_fallthru
      _
    // Predicated region
    $region26: #{tpu_custom_call.1} parent=1 // pred_check
      _
    $region27: #{tpu_custom_call.1} parent=1 // pred_check_branch
      %135 = sbr.rel (0) target = $region29
    $region28: #{tpu_custom_call.1} parent=1 // pred_region
      %136 = dma.done [#allocation5], 16
    $region29: #{tpu_custom_call.1} parent=1 // pred_fallthru
      _
    %137 = vsyncpa [#allocation4], 1
    %138 = vsyncpa [#allocation7], 1
    %139 = vsyncpa [#allocation5], 1

</llo_original>
